<compile_context>
chip_gen: v7x
topology: tpu7x:2x2x1
jax: 0.10.0
libtpu: 0.0.40
codegen_flags: <defaults>
</compile_context>

<pallas_src>
import jax
import jax.numpy as jnp
from jax import lax
from jax.experimental import pallas as pl
from jax.experimental.pallas import tpu as pltpu

EPS = 1e-5


# ----------------------------- Fused Action kernel -----------------------------
def _action_kernel(x_ref, w1_ref, pv_ref, w2_ref, o_ref):
    """o = Linear2( BN1d_train( ReLU( x @ W1 ) ) ).  Fully VMEM-resident.

    pv_ref packs the 1-D params as rows of a (3, max(h1, a)) f32 slab:
      row 0: g1  (BN weight,  length h1)
      row 1: be1 (BN bias,    length h1)
      row 2: b2  (Linear2 bias, length a)
    """
    h1 = w1_ref.shape[1]
    a = w2_ref.shape[1]

    # Linear1 (no bias): bf16 MXU operands, f32 accumulation.
    h = jnp.dot(
        x_ref[...].astype(jnp.bfloat16),
        w1_ref[...],
        preferred_element_type=jnp.float32,
    )
    # ReLU.
    h = jnp.maximum(h, 0.0)

    # BatchNorm1d, training-mode batch statistics (biased variance), folded
    # into a single per-lane scale/shift.  Single-pass stats; clamp var >= 0
    # to guard the rsqrt against cancellation in E[x^2] - E[x]^2.
    mean = jnp.mean(h, axis=0, keepdims=True)                      # (1, h1)
    var = jnp.maximum(
        jnp.mean(h * h, axis=0, keepdims=True) - mean * mean, 0.0
    )                                                              # (1, h1)

    pv = pv_ref[...]                                               # (3, W) f32
    g1 = pv[0:1, :h1]
    be1 = pv[1:2, :h1]
    b2 = pv[2:3, :a]

    scale = g1 * lax.rsqrt(var + EPS)                              # (1, h1)
    shift = be1 - mean * scale                                     # (1, h1)

    # TODO(synk): Dropout(p=0.2) is training-time random masking; implemented
    # here as identity (inference semantics).

    # Linear2 with the BN shift folded into its bias:
    #   y = (h * scale) @ W2 + (shift @ W2 + b2)
    w2 = w2_ref[...]                                               # (h1, a) bf16
    y_bias = (
        jnp.dot(shift.astype(jnp.bfloat16), w2, preferred_element_type=jnp.float32)
        + b2
    )                                                              # (1, a)
    o_ref[...] = (
        jnp.dot(
            (h * scale).astype(jnp.bfloat16),
            w2,
            preferred_element_type=jnp.float32,
        )
        + y_bias
    )


# ----------------------------- Wrapper ------------------------------------------
def action_forward(x, params):
    """x: (B, f*2) f32.  Weights stored pre-transposed for row-major matmul."""
    batch, _ = x.shape
    h1 = params["w1"].shape[1]
    a_dim = params["w2"].shape[1]
    w = max(h1, a_dim)

    # Pack the three 1-D parameter vectors into one (3, W) f32 slab -> one DMA.
    pv = jnp.zeros((3, w), jnp.float32)
    pv = pv.at[0, :h1].set(params["g1"])
    pv = pv.at[1, :h1].set(params["be1"])
    pv = pv.at[2, :a_dim].set(params["b2"])

    vmem = pl.BlockSpec(memory_space=pltpu.MemorySpace.VMEM)

    return pl.pallas_call(
        _action_kernel,
        out_shape=jax.ShapeDtypeStruct((batch, a_dim), jnp.float32),
        in_specs=[vmem] * 4,
        out_specs=vmem,
    )(
        x,                                     # (B, f*2) f32
        params["w1"].astype(jnp.bfloat16),     # (f*2, h1) bf16 (MXU operand)
        pv,                                    # (3, W)    f32 packed params
        params["w2"].astype(jnp.bfloat16),     # (h1, a)   bf16 (MXU operand)
    )


# ----------------------------- Pure-JAX reference (verification) ----------------
def _reference(x, params):
    """Faithful module translation; matmul operands cast to bf16 to match the
    precision actually fed to the MXU (f32 accumulation), BN in f32 two-pass."""
    bf = jnp.bfloat16
    h = jnp.dot(x.astype(bf), params["w1"].astype(bf),
                preferred_element_type=jnp.float32)
    h = jax.nn.relu(h)
    m = h.mean(axis=0, keepdims=True)
    v = ((h - m) ** 2).mean(axis=0, keepdims=True)     # biased (training-mode BN)
    h = (h - m) / jnp.sqrt(v + EPS) * params["g1"] + params["be1"]
    # Dropout -> identity (eval semantics).
    return (
        jnp.dot(h.astype(bf), params["w2"].astype(bf),
                preferred_element_type=jnp.float32)
        + params["b2"]
    )


if __name__ == "__main__":
    # Small shapes implied by the module: f=16 -> input dim 32, h1=64, a=8, batch=8.
    F_DIM, H1, A_DIM, BATCH = 16, 64, 8, 8
    IN_DIM = F_DIM * 2

    key = jax.random.PRNGKey(0)
    ks = jax.random.split(key, 6)
    params = {
        "w1":  0.2 * jax.random.normal(ks[0], (IN_DIM, H1), jnp.float32),
        "g1":  1.0 + 0.1 * jax.random.normal(ks[1], (H1,), jnp.float32),
        "be1": 0.1 * jax.random.normal(ks[2], (H1,), jnp.float32),
        "w2":  0.2 * jax.random.normal(ks[3], (H1, A_DIM), jnp.float32),
        "b2":  0.1 * jax.random.normal(ks[4], (A_DIM,), jnp.float32),
    }
    x = jax.random.normal(ks[5], (BATCH, IN_DIM), jnp.float32)

    out = jax.block_until_ready(action_forward(x, params))
    assert out.shape == (BATCH, A_DIM), out.shape

    ref = _reference(x, params)
    max_err = float(jnp.max(jnp.abs(out - ref)))
    # Tolerance covers the BN scale/shift + bias fold decomposition (separate
    # bf16 roundings of h*scale and shift) and single- vs two-pass variance.
    if not jnp.allclose(out, ref, atol=1e-2, rtol=1e-2):
        raise AssertionError(f"mismatch vs reference, max abs err = {max_err}")
    print("KERNEL_OK")
</pallas_src>

<mosaic_0001>
module attributes {stable_mosaic.version = 11 : i64} {
  func.func @_action_kernel(%arg0: memref<8x32xf32, #tpu.memory_space<vmem>>, %arg1: memref<32x64xbf16, #tpu.memory_space<vmem>>, %arg2: memref<3x64xf32, #tpu.memory_space<vmem>>, %arg3: memref<64x8xbf16, #tpu.memory_space<vmem>>, %arg4: memref<8x8xf32, #tpu.memory_space<vmem>>) attributes {dimension_semantics = [], scalar_prefetch = 0 : i64, scratch_operands = 0 : i64, tpu.core_type = #tpu.core_type<tc>} {
    %c0 = arith.constant 0 : index
    %c0_0 = arith.constant 0 : index
    %0 = vector.load %arg0[%c0, %c0_0] : memref<8x32xf32, #tpu.memory_space<vmem>>, vector<8x32xf32>
    %1 = arith.truncf %0 : vector<8x32xf32> to vector<8x32xbf16>
    %c0_1 = arith.constant 0 : index
    %c0_2 = arith.constant 0 : index
    %2 = vector.load %arg1[%c0_1, %c0_2] : memref<32x64xbf16, #tpu.memory_space<vmem>>, vector<32x64xbf16>
    %cst = arith.constant dense<0.000000e+00> : vector<8x64xf32>
    %3 = tpu.matmul %1, %2, %cst {dimension_numbers = #tpu.dot_dimension_numbers<[1], [0], [0], [1], [0, 0, 1, 1], [], []>} : vector<8x32xbf16>, vector<32x64xbf16>, vector<8x64xf32> -> vector<8x64xf32>
    %cst_3 = arith.constant 0.000000e+00 : f32
    %4 = vector.broadcast %cst_3 : f32 to vector<8x64xf32>
    %5 = arith.maximumf %3, %4 : vector<8x64xf32>
    %cst_4 = arith.constant dense<0.000000e+00> : vector<64xf32>
    %6 = vector.multi_reduction <add>, %5, %cst_4 [0] : vector<8x64xf32> to vector<64xf32>
    %7 = vector.shape_cast %6 : vector<64xf32> to vector<1x64xf32>
    %cst_5 = arith.constant 8.000000e+00 : f32
    %8 = vector.broadcast %cst_5 : f32 to vector<1x64xf32>
    %9 = arith.divf %7, %8 : vector<1x64xf32>
    %10 = arith.mulf %5, %5 : vector<8x64xf32>
    %cst_6 = arith.constant dense<0.000000e+00> : vector<64xf32>
    %11 = vector.multi_reduction <add>, %10, %cst_6 [0] : vector<8x64xf32> to vector<64xf32>
    %12 = vector.shape_cast %11 : vector<64xf32> to vector<1x64xf32>
    %cst_7 = arith.constant 8.000000e+00 : f32
    %13 = vector.broadcast %cst_7 : f32 to vector<1x64xf32>
    %14 = arith.divf %12, %13 : vector<1x64xf32>
    %15 = arith.mulf %9, %9 : vector<1x64xf32>
    %16 = arith.subf %14, %15 : vector<1x64xf32>
    %cst_8 = arith.constant 0.000000e+00 : f32
    %17 = vector.broadcast %cst_8 : f32 to vector<1x64xf32>
    %18 = arith.maximumf %16, %17 : vector<1x64xf32>
    %c0_9 = arith.constant 0 : index
    %c0_10 = arith.constant 0 : index
    %19 = vector.load %arg2[%c0_9, %c0_10] : memref<3x64xf32, #tpu.memory_space<vmem>>, vector<3x64xf32>
    %20 = vector.extract_strided_slice %19 {offsets = [0, 0], sizes = [1, 64], strides = [1, 1]} : vector<3x64xf32> to vector<1x64xf32>
    %21 = vector.extract_strided_slice %19 {offsets = [1, 0], sizes = [1, 64], strides = [1, 1]} : vector<3x64xf32> to vector<1x64xf32>
    %22 = vector.extract_strided_slice %19 {offsets = [2, 0], sizes = [1, 8], strides = [1, 1]} : vector<3x64xf32> to vector<1x8xf32>
    %cst_11 = arith.constant 9.99999974E-6 : f32
    %23 = vector.broadcast %cst_11 : f32 to vector<1x64xf32>
    %24 = arith.addf %18, %23 : vector<1x64xf32>
    %25 = math.rsqrt %24 : vector<1x64xf32>
    %26 = arith.mulf %20, %25 : vector<1x64xf32>
    %27 = arith.mulf %9, %26 : vector<1x64xf32>
    %28 = arith.subf %21, %27 : vector<1x64xf32>
    %c0_12 = arith.constant 0 : index
    %c0_13 = arith.constant 0 : index
    %29 = vector.load %arg3[%c0_12, %c0_13] : memref<64x8xbf16, #tpu.memory_space<vmem>>, vector<64x8xbf16>
    %30 = arith.truncf %28 : vector<1x64xf32> to vector<1x64xbf16>
    %cst_14 = arith.constant dense<0.000000e+00> : vector<1x8xf32>
    %31 = tpu.matmul %30, %29, %cst_14 {dimension_numbers = #tpu.dot_dimension_numbers<[1], [0], [0], [1], [0, 0, 1, 1], [], []>} : vector<1x64xbf16>, vector<64x8xbf16>, vector<1x8xf32> -> vector<1x8xf32>
    %32 = arith.addf %31, %22 : vector<1x8xf32>
    %33 = vector.broadcast %26 : vector<1x64xf32> to vector<8x64xf32>
    %34 = arith.mulf %5, %33 : vector<8x64xf32>
    %35 = arith.truncf %34 : vector<8x64xf32> to vector<8x64xbf16>
    %cst_15 = arith.constant dense<0.000000e+00> : vector<8x8xf32>
    %36 = tpu.matmul %35, %29, %cst_15 {dimension_numbers = #tpu.dot_dimension_numbers<[1], [0], [0], [1], [0, 0, 1, 1], [], []>} : vector<8x64xbf16>, vector<64x8xbf16>, vector<8x8xf32> -> vector<8x8xf32>
    %37 = vector.broadcast %32 : vector<1x8xf32> to vector<8x8xf32>
    %38 = arith.addf %36, %37 : vector<8x8xf32>
    %c0_16 = arith.constant 0 : index
    %c0_17 = arith.constant 0 : index
    %39 = vector.load %arg4[%c0_16, %c0_17] : memref<8x8xf32, #tpu.memory_space<vmem>>, vector<8x8xf32>
    tpu.vector_store %arg4[%c0_16, %c0_17], %38 {strides = array<i32>} : memref<8x8xf32, #tpu.memory_space<vmem>>, vector<8x8xf32>,
    return
  }
}

</mosaic_0001>

<llo_original>
// kernel: tpu_custom_call.1
$region0: #{tpu_custom_call.1}
  #allocation0 [shape = 'u32[]', space=smem, size = 0x4, offset = 0x4, fixed_abs, tag = 'smem constant byte address 0x4 - core index']
  #allocation1 [shape = 'u32[144,128]{1,0:T(1,128)}', space=vmem, size = 0x12000, scoped, tag = 'internal scratch']
  %s0 = inlined_call_operand.vmem [shape: f32[8,32], index: 0, kind: input, shape index: {}]
  %s1 = inlined_call_operand.vmem [shape: bf16[32,64], index: 1, kind: input, shape index: {}]
  %s2 = inlined_call_operand.vmem [shape: f32[3,64], index: 2, kind: input, shape index: {}]
  %s3 = inlined_call_operand.vmem [shape: bf16[64,8], index: 3, kind: input, shape index: {}]
  %s4 = inlined_call_operand.hbm [shape: f32[8,8], index: 4, kind: output, shape index: {}]
  %s5 = sld [smem:[#allocation0]]
  $region26: #{tpu_custom_call.1} parent=0
    _
  %s7 = ssub.s32 1, %s5
  %s8 = scalar_select 0, %s7, %s5
  $region1: #{tpu_custom_call.1} parent=0
    #allocation2 [shape = 'u8[4096]{0}', space=vmem, size = 0x1000, scoped, tag = 'output window, operand 0, single buffered']
    #allocation3 [shape = 's32[1]{0}', space=sflag, size = 0x4, scoped, tag = 'scoped memory for tpu_custom_call.1']
    %9 = vsyncpa [#allocation3], 0
    // Predicated region
    $region2: #{tpu_custom_call.1} parent=1 // pred_check
      _
    $region3: #{tpu_custom_call.1} parent=1 // pred_check_branch
      %11 = sbr.rel (0) target = $region5
    $region4: #{tpu_custom_call.1} parent=1 // pred_region
      _
    $region5: #{tpu_custom_call.1} parent=1 // pred_fallthru
      _
    // Predicated region
    $region6: #{tpu_custom_call.1} parent=1 // pred_check
      _
    $region7: #{tpu_custom_call.1} parent=1 // pred_check_branch
      %13 = sbr.rel (0) target = $region9
    $region8: #{tpu_custom_call.1} parent=1 // pred_region
      _
    $region9: #{tpu_custom_call.1} parent=1 // pred_fallthru
      _
    // Predicated region
    $region10: #{tpu_custom_call.1} parent=1 // pred_check
      _
    $region11: #{tpu_custom_call.1} parent=1 // pred_check_branch
      %15 = sbr.rel (0) target = $region13
    $region12: #{tpu_custom_call.1} parent=1 // pred_region
      _
    $region13: #{tpu_custom_call.1} parent=1 // pred_fallthru
      _
    // Predicated region
    $region14: #{tpu_custom_call.1} parent=1 // pred_check
      _
    $region15: #{tpu_custom_call.1} parent=1 // pred_check_branch
      %17 = sbr.rel (0) target = $region17
    $region16: #{tpu_custom_call.1} parent=1 // pred_region
      _
    $region17: #{tpu_custom_call.1} parent=1 // pred_fallthru
      _
    %v19 = vld [vmem:[%s0] sm:$0xff]
    %v20 = vpack.c.bf16 %v19, %v19
    %v21 = vld [vmem:[%s1] sm:$0xf]
    %v22 = vld [vmem:[%s1 + $0x4] sm:$0xf]
    %v23 = vld [vmem:[%s1 + $0x8] sm:$0xf]
    %v24 = vld [vmem:[%s1 + $0xc] sm:$0xf]
    %v29 = vunpack.c.l.b16 %v21
    %v30 = vunpack.c.l.b16 %v22
    %v31 = vunpack.c.l.b16 %v23
    %v32 = vunpack.c.l.b16 %v24
    %v33 = vpack.c.b16 %v30, %v29
    %v34 = vpack.c.b16 %v32, %v31
    %vm37 = vcmask 261120
    %v39 = vsel %vm37, %v20, 0
    %41 = vmatprep.subr.bf16.mxu0 0
    %42 = vmatpush1.bf16.msra.mxu0 %v33
    %43 = vmatprep.subr.bf16.mxu0 0
    %44 = vmatpush1.bf16.msra.mxu0 %v34
    %45 = vmatprep.subr.bf16.mxu0 0
    %46 = vmatpush1.bf16.msra.mxu0 0
    %47 = vmatprep.subr.bf16.mxu0 0
    %48 = vmatpush1.bf16.msra.mxu0 0
    %49 = vmatprep.subr.bf16.mxu0 0
    %50 = vmatpush1.bf16.msra.mxu0 0
    %51 = vmatprep.subr.bf16.mxu0 0
    %52 = vmatpush1.bf16.msra.mxu0 0
    %53 = vmatprep.subr.bf16.mxu0 0
    %54 = vmatpush1.bf16.msra.mxu0 0
    %55 = vmatprep.subr.bf16.mxu0 0
    %56 = vmatpush1.bf16.msra.mxu0 0
    %57 = vmatprep.subr.bf16.mxu0 0
    %58 = vmatpush1.bf16.msra.mxu0 0
    %59 = vmatprep.subr.bf16.mxu0 0
    %60 = vmatpush1.bf16.msra.mxu0 0
    %61 = vmatprep.subr.bf16.mxu0 0
    %62 = vmatpush1.bf16.msra.mxu0 0
    %63 = vmatprep.subr.bf16.mxu0 0
    %64 = vmatpush1.bf16.msra.mxu0 0
    %65 = vmatprep.subr.bf16.mxu0 0
    %66 = vmatpush1.bf16.msra.mxu0 0
    %67 = vmatprep.subr.bf16.mxu0 0
    %68 = vmatpush1.bf16.msra.mxu0 0
    %69 = vmatprep.subr.bf16.mxu0 0
    %70 = vmatpush1.bf16.msra.mxu0 0
    %71 = vmatprep.subr.bf16.mxu0 0
    %72 = vmatpush1.bf16.msra.mxu0 0
    %73 = vmatprep.mubr.bf16.mxu0 0
    %74 = vmatmul.mubr.bf16.gmra.mrb[0].mxu0 %v39
    %v75 = vpop.f32.mrb[0].mxu0
    %v76 = vadd.f32 0.0, %v75
    %v77 = vpop.f32.mrb[0].mxu0
    %v78 = vpop.f32.mrb[0].mxu0
    %v79 = vpop.f32.mrb[0].mxu0
    %80 = vdwg.mxu0
    %v81 = vmax.f32 %v76, 0.0
    %vm82 = vcmask 523264
    %v83 = vsel %vm82, %v81, 0.0
    %v84 = vrot.slane %v83, 4
    %v85 = vadd.f32 %v83, %v84
    %v86 = vrot.slane %v85, 2
    %v87 = vadd.f32 %v85, %v86
    %v88 = vrot.slane %v87, 1
    %v89 = vadd.f32 %v87, %v88
    %v90 = vrcp.pop 8.0
    %v91 = vmul.f32 %v89, %v90
    %v92 = vmul.f32 %v81, %v81
    %v93 = vsel %vm82, %v92, 0.0
    %v94 = vrot.slane %v93, 4
    %v95 = vadd.f32 %v93, %v94
    %v96 = vrot.slane %v95, 2
    %v97 = vadd.f32 %v95, %v96
    %v98 = vrot.slane %v97, 1
    %v99 = vadd.f32 %v97, %v98
    %v100 = vmul.f32 %v99, %v90
    %v101 = vmul.f32 %v91, %v91
    %v102 = vsub.f32 %v100, %v101
    %v103 = vmax.f32 %v102, 0.0
    %v104 = vld [vmem:[%s2] sm:$0x7]
    %v105 = vadd.f32 %v103, 1e-05
    %v106 = vrsqrt.pop %v105
    %v107 = vmul.f32 %v104, %v106
    %v108 = vmul.f32 %v91, %v107
    %v110 = vrot.slane %v108, 7
    %v112 = vsub.f32 %v104, %v110
    %v113 = vld [vmem:[%s3] sm:$0xf]
    %v114 = vld [vmem:[%s3 + $0x4] sm:$0xf]
    %v115 = vld [vmem:[%s3 + $0x8] sm:$0xf]
    %v116 = vld [vmem:[%s3 + $0xc] sm:$0xf]
    %v117 = vld [vmem:[%s3 + $0x10] sm:$0xf]
    %v118 = vld [vmem:[%s3 + $0x14] sm:$0xf]
    %v119 = vld [vmem:[%s3 + $0x18] sm:$0xf]
    %v120 = vld [vmem:[%s3 + $0x1c] sm:$0xf]
    %v121 = vpack.c.bf16 %v112, %v112
    %v123 = vshrl.u32 %v121, 16
    %v133 = vunpack.c.l.b16 %v113
    %v134 = vunpack.c.l.b16 %v114
    %v135 = vunpack.c.l.b16 %v115
    %v136 = vunpack.c.l.b16 %v116
    %v137 = vunpack.c.l.b16 %v117
    %v138 = vunpack.c.l.b16 %v118
    %v139 = vunpack.c.l.b16 %v119
    %v140 = vunpack.c.l.b16 %v120
    %v141 = vpack.c.b16 %v134, %v133
    %v142 = vpack.c.b16 %v136, %v135
    %v143 = vpack.c.b16 %v138, %v137
    %v144 = vpack.c.b16 %v140, %v139
    %v150 = vrot.slane %v104, 2
    %v153 = vsel %vm82, %v123, 0
    %155 = vmatprep.subr.bf16.mxu0 0
    %156 = vmatpush1.bf16.msra.mxu0 %v141
    %157 = vmatprep.subr.bf16.mxu0 0
    %158 = vmatpush1.bf16.msra.mxu0 %v142
    %159 = vmatprep.subr.bf16.mxu0 0
    %160 = vmatpush1.bf16.msra.mxu0 %v143
    %161 = vmatprep.subr.bf16.mxu0 0
    %162 = vmatpush1.bf16.msra.mxu0 %v144
    %163 = vmatprep.subr.bf16.mxu0 0
    %164 = vmatpush1.bf16.msra.mxu0 0
    %165 = vmatprep.subr.bf16.mxu0 0
    %166 = vmatpush1.bf16.msra.mxu0 0
    %167 = vmatprep.subr.bf16.mxu0 0
    %168 = vmatpush1.bf16.msra.mxu0 0
    %169 = vmatprep.subr.bf16.mxu0 0
    %170 = vmatpush1.bf16.msra.mxu0 0
    %171 = vmatprep.subr.bf16.mxu0 0
    %172 = vmatpush1.bf16.msra.mxu0 0
    %173 = vmatprep.subr.bf16.mxu0 0
    %174 = vmatpush1.bf16.msra.mxu0 0
    %175 = vmatprep.subr.bf16.mxu0 0
    %176 = vmatpush1.bf16.msra.mxu0 0
    %177 = vmatprep.subr.bf16.mxu0 0
    %178 = vmatpush1.bf16.msra.mxu0 0
    %179 = vmatprep.subr.bf16.mxu0 0
    %180 = vmatpush1.bf16.msra.mxu0 0
    %181 = vmatprep.subr.bf16.mxu0 0
    %182 = vmatpush1.bf16.msra.mxu0 0
    %183 = vmatprep.subr.bf16.mxu0 0
    %184 = vmatpush1.bf16.msra.mxu0 0
    %185 = vmatprep.subr.bf16.mxu0 0
    %186 = vmatpush1.bf16.msra.mxu0 0
    %187 = vmatprep.mubr.bf16.mxu0 0
    %188 = vmatmul.mubr.bf16.gmra.mrb[0].mxu0 %v153
    %v189 = vpop.f32.mrb[0].mxu0
    %v190 = vadd.f32 %v150, %v189
    %v191 = vpop.f32.mrb[0].mxu0
    %v192 = vpop.f32.mrb[0].mxu0
    %v193 = vpop.f32.mrb[0].mxu0
    %194 = vdwg.mxu0
    %v195 = vlaneseq
    %v196 = vshrl.u32 %v195, 7
    %v197 = vsub.s32 0, %v196
    %v198 = vrot.slane %v107, %v197
    %v199 = vmul.f32 %v81, %v198
    %v200 = vpack.c.bf16 %v199, %v199
    %v201 = vlaneseq
    %v202 = vshrl.u32 %v201, 7
    %v203 = vsub.s32 0, %v202
    %v204 = vrot.slane %v190, %v203
    %v206 = vsel %vm82, %v200, 0
    %208 = vmatprep.subr.bf16.mxu0 0
    %209 = vmatpush1.bf16.msra.mxu0 %v141
    %210 = vmatprep.subr.bf16.mxu0 0
    %211 = vmatpush1.bf16.msra.mxu0 %v142
    %212 = vmatprep.subr.bf16.mxu0 0
    %213 = vmatpush1.bf16.msra.mxu0 %v143
    %214 = vmatprep.subr.bf16.mxu0 0
    %215 = vmatpush1.bf16.msra.mxu0 %v144
    %216 = vmatprep.subr.bf16.mxu0 0
    %217 = vmatpush1.bf16.msra.mxu0 0
    %218 = vmatprep.subr.bf16.mxu0 0
    %219 = vmatpush1.bf16.msra.mxu0 0
    %220 = vmatprep.subr.bf16.mxu0 0
    %221 = vmatpush1.bf16.msra.mxu0 0
    %222 = vmatprep.subr.bf16.mxu0 0
    %223 = vmatpush1.bf16.msra.mxu0 0
    %224 = vmatprep.subr.bf16.mxu0 0
    %225 = vmatpush1.bf16.msra.mxu0 0
    %226 = vmatprep.subr.bf16.mxu0 0
    %227 = vmatpush1.bf16.msra.mxu0 0
    %228 = vmatprep.subr.bf16.mxu0 0
    %229 = vmatpush1.bf16.msra.mxu0 0
    %230 = vmatprep.subr.bf16.mxu0 0
    %231 = vmatpush1.bf16.msra.mxu0 0
    %232 = vmatprep.subr.bf16.mxu0 0
    %233 = vmatpush1.bf16.msra.mxu0 0
    %234 = vmatprep.subr.bf16.mxu0 0
    %235 = vmatpush1.bf16.msra.mxu0 0
    %236 = vmatprep.subr.bf16.mxu0 0
    %237 = vmatpush1.bf16.msra.mxu0 0
    %238 = vmatprep.subr.bf16.mxu0 0
    %239 = vmatpush1.bf16.msra.mxu0 0
    %240 = vmatprep.mubr.bf16.mxu0 0
    %241 = vmatmul.mubr.bf16.gmra.mrb[0].mxu0 %v206
    %v242 = vpop.f32.mrb[0].mxu0
    %v243 = vadd.f32 %v204, %v242
    %v244 = vpop.f32.mrb[0].mxu0
    %v245 = vpop.f32.mrb[0].mxu0
    %v246 = vpop.f32.mrb[0].mxu0
    %247 = vdwg.mxu0
    %vm248 = vcmask 64512
    %249 = vst.msk [vmem:[#allocation2] sm:$0xff] %vm248, %v243
    // Predicated region
    $region18: #{tpu_custom_call.1} parent=1 // pred_check
      _
    $region19: #{tpu_custom_call.1} parent=1 // pred_check_branch
      %251 = sbr.rel (0) target = $region21
    $region20: #{tpu_custom_call.1} parent=1 // pred_region
      %s253 = ssub.s32 128, 128
      %254 = vsyncadd [#allocation3], %s253
      %s256 = sshll.u32 [#allocation2], 4
      %s257 = int_to_ptr.vmem [resolvable:$true] %s256
      %259 = dma.vmem_to_hbm [thread:$0]  %s257, 128, %s4, [#allocation3]
    $region21: #{tpu_custom_call.1} parent=1 // pred_fallthru
      _
    // Predicated region
    $region22: #{tpu_custom_call.1} parent=1 // pred_check
      _
    $region23: #{tpu_custom_call.1} parent=1 // pred_check_branch
      %261 = sbr.rel (0) target = $region25
    $region24: #{tpu_custom_call.1} parent=1 // pred_region
      %262 = dma.done [#allocation3], 128
    $region25: #{tpu_custom_call.1} parent=1 // pred_fallthru
      _
    %263 = vsyncpa [#allocation3], 1

</llo_original>
